<compile_context>
chip_gen: v7x
topology: tpu7x:2x2x1
jax: 0.10.0
libtpu: 0.0.40
codegen_flags: <defaults>
</compile_context>

<pallas_src>
import functools

import jax
import jax.numpy as jnp
from jax import lax
from jax.experimental import pallas as pl
from jax.experimental.pallas import tpu as pltpu

LANES = 128
MAX_BLOCK_ROWS = 4096   # (4096, 128) f32 block = 2 MiB / input / buffer
NUM_CORES = 2           # parallel grid axis (v7x megacore); harmless on 1-TC chips


def _tversky_partials_kernel(t_ref, x_ref, tp_ref, sp_ref, st_ref, *,
                             block_rows, steps_per_core,
                             n_full_rows, n_rem, needs_mask):
    """Accumulate lane-wise partial sums of t*p, p, t into the output refs."""
    i = pl.program_id(0)   # parallel (core) axis
    j = pl.program_id(1)   # reduction axis

    # Zero this core's accumulators at the start of its reduction loop.
    @pl.when(j == 0)
    def _():
        tp_ref[...] = jnp.zeros_like(tp_ref)
        sp_ref[...] = jnp.zeros_like(sp_ref)
        st_ref[...] = jnp.zeros_like(st_ref)

    t = t_ref[...].astype(jnp.float32)
    p = jax.nn.sigmoid(x_ref[...].astype(jnp.float32))

    if needs_mask:
        # Global row offset computed from the *unclamped* logical block index,
        # so padded / duplicated / edge blocks are zeroed out entirely.
        row0 = (i * steps_per_core + j) * block_rows
        g_row = row0 + lax.broadcasted_iota(jnp.int32, (block_rows, LANES), 0)
        valid = g_row < n_full_rows
        if n_rem:
            lane = lax.broadcasted_iota(jnp.int32, (block_rows, LANES), 1)
            valid = valid | ((g_row == n_full_rows) & (lane < n_rem))
        t = jnp.where(valid, t, 0.0)
        p = jnp.where(valid, p, 0.0)

    # Lane-wise partial sums only (VALU adds + one sublane reduce per quantity);
    # the full cross-lane reduction happens once, outside the kernel.
    tp_ref[...] += jnp.sum(t * p, axis=0, keepdims=True)
    sp_ref[...] += jnp.sum(p, axis=0, keepdims=True)
    st_ref[...] += jnp.sum(t, axis=0, keepdims=True)


def tversky_loss(target, output_logits, alpha, smooth=1.0):
    """Pallas TPU implementation of TverskyLoss.forward(target_, output_)."""
    beta = 1.0 - alpha

    # No dtype upcast in the wrapper: bf16/int inputs travel narrow through HBM
    # and are cast to f32 in-register inside the kernel.
    t_flat = jnp.reshape(target, (-1,))
    x_flat = jnp.reshape(output_logits, (-1,))
    n = t_flat.shape[0]

    # Pad only to a lane multiple when strictly necessary (at most 127 elems);
    # padded elements are masked in-kernel so the pad value is irrelevant.
    pad = (-n) % LANES
    if pad:
        t_flat = jnp.pad(t_flat, (0, pad))
        x_flat = jnp.pad(x_flat, (0, pad))

    rows = (n + pad) // LANES
    t2d = t_flat.reshape(rows, LANES)
    x2d = x_flat.reshape(rows, LANES)

    # Tiling: big blocks to amortize per-step overhead, sized to fit every
    # generation's default scoped VMEM (2 inputs x 2 buffers x 2 MiB = 8 MiB).
    block_rows = rows if rows <= MAX_BLOCK_ROWS else MAX_BLOCK_ROWS
    nblocks = pl.cdiv(rows, block_rows)
    ncores = NUM_CORES if nblocks >= NUM_CORES else 1
    steps_per_core = pl.cdiv(nblocks, ncores)

    # Mask only if the padded grid coverage exceeds the true element count.
    cover = ncores * steps_per_core * block_rows * LANES
    needs_mask = cover != n
    n_full_rows = n // LANES
    n_rem = n % LANES

    def in_map(i, j):
        # Clamp so the (static) padding steps of the parallel split never DMA a
        # fully out-of-range block; those steps are masked to zero anyway.
        return (jnp.minimum(i * steps_per_core + j, nblocks - 1), 0)

    def out_map(i, j):
        return (i, 0, 0)   # constant across j -> output block is the accumulator

    kernel = functools.partial(
        _tversky_partials_kernel,
        block_rows=block_rows,
        steps_per_core=steps_per_core,
        n_full_rows=n_full_rows,
        n_rem=n_rem,
        needs_mask=needs_mask,
    )

    part_shape = jax.ShapeDtypeStruct((ncores, 1, LANES), jnp.float32)
    part_spec = pl.BlockSpec((None, 1, LANES), out_map)

    tp, sp, st = pl.pallas_call(
        kernel,
        out_shape=(part_shape, part_shape, part_shape),
        grid_spec=pltpu.PrefetchScalarGridSpec(
            num_scalar_prefetch=0,
            grid=(ncores, steps_per_core),
            in_specs=[
                pl.BlockSpec((block_rows, LANES), in_map),
                pl.BlockSpec((block_rows, LANES), in_map),
            ],
            out_specs=(part_spec, part_spec, part_spec),
        ),
        compiler_params=pltpu.CompilerParams(
            dimension_semantics=("parallel", "arbitrary"),
        ),
    )(t2d, x2d)

    # Tiny epilogue in plain JAX: cross-lane/core reduce + Tversky formula.
    PG = jnp.sum(tp)            # sum(t * p)
    SP = jnp.sum(sp)            # sum(p)
    ST = jnp.sum(st)            # sum(t)
    G_P = SP - PG               # sum((1 - t) * p)
    P_G = ST - PG               # sum((1 - p) * t)
    return (PG + smooth) / (PG + alpha * G_P + beta * P_G + smooth)


def tversky_loss_ref(target, output_logits, alpha, smooth=1.0):
    """Pure-JAX reference mirroring the PyTorch forward exactly."""
    beta = 1.0 - alpha
    p = jax.nn.sigmoid(output_logits.astype(jnp.float32)).reshape(-1)
    t = target.astype(jnp.float32).reshape(-1)
    PG = jnp.sum(t * p)
    G_P = jnp.sum((1.0 - t) * p)
    P_G = jnp.sum((1.0 - p) * t)
    return (PG + smooth) / (PG + alpha * G_P + beta * P_G + smooth)


if __name__ == "__main__":
    key = jax.random.PRNGKey(0)
    k1, k2 = jax.random.split(key)

    # NCHW inputs, as in the PyTorch module (conv-style activations / labels).
    B, C, H, W = 2, 4, 16, 16
    output_logits = jax.random.normal(k1, (B, C, H, W), dtype=jnp.float32)
    target = (jax.random.uniform(k2, (B, C, H, W)) > 0.5).astype(jnp.float32)

    alpha = 0.7

    loss = tversky_loss(target, output_logits, alpha)
    loss = jax.block_until_ready(loss)

    ref = tversky_loss_ref(target, output_logits, alpha)
    assert jnp.allclose(loss, ref, rtol=1e-5, atol=1e-5), (loss, ref)

    print("KERNEL_OK")
</pallas_src>

<mosaic_0001>
module attributes {stable_mosaic.version = 11 : i64} {
  func.func @_tversky_partials_kernel(%arg0: i32, %arg1: i32, %arg2: memref<16x128xf32, #tpu.memory_space<vmem>>, %arg3: memref<16x128xf32, #tpu.memory_space<vmem>>, %arg4: memref<1x1x128xf32, #tpu.memory_space<vmem>>, %arg5: memref<1x1x128xf32, #tpu.memory_space<vmem>>, %arg6: memref<1x1x128xf32, #tpu.memory_space<vmem>>) attributes {dimension_semantics = [#tpu.dimension_semantics<parallel>, #tpu.dimension_semantics<arbitrary>], iteration_bounds = array<i64: 1, 1>, scalar_prefetch = 0 : i64, scratch_operands = 0 : i64, tpu.core_type = #tpu.core_type<tc>, window_params = [{transform_indices = @transform_0, window_bounds = array<i64: 16, 128>}, {transform_indices = @transform_1, window_bounds = array<i64: 16, 128>}, {transform_indices = @transform_2, window_bounds = array<i64: 1, 1, 128>}, {transform_indices = @transform_3, window_bounds = array<i64: 1, 1, 128>}, {transform_indices = @transform_4, window_bounds = array<i64: 1, 1, 128>}]} {
    %c0_i32 = arith.constant 0 : i32
    %0 = arith.cmpi eq, %arg1, %c0_i32 : i32
    %1 = arith.extui %0 : i1 to i32
    %c0_i32_0 = arith.constant 0 : i32
    %2 = arith.cmpi ne, %1, %c0_i32_0 : i32
    scf.if %2 {
      %cst_25 = arith.constant 0.000000e+00 : f32
      %35 = vector.broadcast %cst_25 : f32 to vector<1x128xf32>
      %c0_26 = arith.constant 0 : index
      %c0_27 = arith.constant 0 : index
      %c0_28 = arith.constant 0 : index
      %36 = vector.load %arg4[%c0_26, %c0_27, %c0_28] : memref<1x1x128xf32, #tpu.memory_space<vmem>>, vector<1x1x128xf32>
      %37 = vector.shape_cast %36 : vector<1x1x128xf32> to vector<1x128xf32>
      %38 = vector.shape_cast %35 : vector<1x128xf32> to vector<1x1x128xf32>
      tpu.vector_store %arg4[%c0_26, %c0_27, %c0_28], %38 {strides = array<i32>} : memref<1x1x128xf32, #tpu.memory_space<vmem>>, vector<1x1x128xf32>,
      %cst_29 = arith.constant 0.000000e+00 : f32
      %39 = vector.broadcast %cst_29 : f32 to vector<1x128xf32>
      %c0_30 = arith.constant 0 : index
      %c0_31 = arith.constant 0 : index
      %c0_32 = arith.constant 0 : index
      %40 = vector.load %arg5[%c0_30, %c0_31, %c0_32] : memref<1x1x128xf32, #tpu.memory_space<vmem>>, vector<1x1x128xf32>
      %41 = vector.shape_cast %40 : vector<1x1x128xf32> to vector<1x128xf32>
      %42 = vector.shape_cast %39 : vector<1x128xf32> to vector<1x1x128xf32>
      tpu.vector_store %arg5[%c0_30, %c0_31, %c0_32], %42 {strides = array<i32>} : memref<1x1x128xf32, #tpu.memory_space<vmem>>, vector<1x1x128xf32>,
      %cst_33 = arith.constant 0.000000e+00 : f32
      %43 = vector.broadcast %cst_33 : f32 to vector<1x128xf32>
      %c0_34 = arith.constant 0 : index
      %c0_35 = arith.constant 0 : index
      %c0_36 = arith.constant 0 : index
      %44 = vector.load %arg6[%c0_34, %c0_35, %c0_36] : memref<1x1x128xf32, #tpu.memory_space<vmem>>, vector<1x1x128xf32>
      %45 = vector.shape_cast %44 : vector<1x1x128xf32> to vector<1x128xf32>
      %46 = vector.shape_cast %43 : vector<1x128xf32> to vector<1x1x128xf32>
      tpu.vector_store %arg6[%c0_34, %c0_35, %c0_36], %46 {strides = array<i32>} : memref<1x1x128xf32, #tpu.memory_space<vmem>>, vector<1x1x128xf32>,
    } else {
    }
    %c0 = arith.constant 0 : index
    %c0_1 = arith.constant 0 : index
    %3 = vector.load %arg2[%c0, %c0_1] : memref<16x128xf32, #tpu.memory_space<vmem>>, vector<16x128xf32>
    %c0_2 = arith.constant 0 : index
    %c0_3 = arith.constant 0 : index
    %4 = vector.load %arg3[%c0_2, %c0_3] : memref<16x128xf32, #tpu.memory_space<vmem>>, vector<16x128xf32>
    %5 = arith.negf %4 : vector<16x128xf32>
    %6 = math.exp %5 : vector<16x128xf32>
    %cst = arith.constant 1.000000e+00 : f32
    %7 = vector.broadcast %cst : f32 to vector<16x128xf32>
    %8 = arith.addf %7, %6 : vector<16x128xf32>
    %9 = arith.divf %7, %8 : vector<16x128xf32>
    %c0_4 = arith.constant 0 : index
    %c0_5 = arith.constant 0 : index
    %c0_6 = arith.constant 0 : index
    %10 = vector.load %arg4[%c0_4, %c0_5, %c0_6] : memref<1x1x128xf32, #tpu.memory_space<vmem>>, vector<1x1x128xf32>
    %11 = vector.shape_cast %10 : vector<1x1x128xf32> to vector<1x128xf32>
    %12 = arith.mulf %3, %9 : vector<16x128xf32>
    %cst_7 = arith.constant dense<0.000000e+00> : vector<128xf32>
    %13 = vector.multi_reduction <add>, %12, %cst_7 [0] : vector<16x128xf32> to vector<128xf32>
    %14 = vector.shape_cast %13 : vector<128xf32> to vector<1x128xf32>
    %15 = arith.addf %11, %14 : vector<1x128xf32>
    %c0_8 = arith.constant 0 : index
    %c0_9 = arith.constant 0 : index
    %c0_10 = arith.constant 0 : index
    %16 = vector.load %arg4[%c0_8, %c0_9, %c0_10] : memref<1x1x128xf32, #tpu.memory_space<vmem>>, vector<1x1x128xf32>
    %17 = vector.shape_cast %16 : vector<1x1x128xf32> to vector<1x128xf32>
    %18 = vector.shape_cast %15 : vector<1x128xf32> to vector<1x1x128xf32>
    tpu.vector_store %arg4[%c0_8, %c0_9, %c0_10], %18 {strides = array<i32>} : memref<1x1x128xf32, #tpu.memory_space<vmem>>, vector<1x1x128xf32>,
    %c0_11 = arith.constant 0 : index
    %c0_12 = arith.constant 0 : index
    %c0_13 = arith.constant 0 : index
    %19 = vector.load %arg5[%c0_11, %c0_12, %c0_13] : memref<1x1x128xf32, #tpu.memory_space<vmem>>, vector<1x1x128xf32>
    %20 = vector.shape_cast %19 : vector<1x1x128xf32> to vector<1x128xf32>
    %cst_14 = arith.constant dense<0.000000e+00> : vector<128xf32>
    %21 = vector.multi_reduction <add>, %9, %cst_14 [0] : vector<16x128xf32> to vector<128xf32>
    %22 = vector.shape_cast %21 : vector<128xf32> to vector<1x128xf32>
    %23 = arith.addf %20, %22 : vector<1x128xf32>
    %c0_15 = arith.constant 0 : index
    %c0_16 = arith.constant 0 : index
    %c0_17 = arith.constant 0 : index
    %24 = vector.load %arg5[%c0_15, %c0_16, %c0_17] : memref<1x1x128xf32, #tpu.memory_space<vmem>>, vector<1x1x128xf32>
    %25 = vector.shape_cast %24 : vector<1x1x128xf32> to vector<1x128xf32>
    %26 = vector.shape_cast %23 : vector<1x128xf32> to vector<1x1x128xf32>
    tpu.vector_store %arg5[%c0_15, %c0_16, %c0_17], %26 {strides = array<i32>} : memref<1x1x128xf32, #tpu.memory_space<vmem>>, vector<1x1x128xf32>,
    %c0_18 = arith.constant 0 : index
    %c0_19 = arith.constant 0 : index
    %c0_20 = arith.constant 0 : index
    %27 = vector.load %arg6[%c0_18, %c0_19, %c0_20] : memref<1x1x128xf32, #tpu.memory_space<vmem>>, vector<1x1x128xf32>
    %28 = vector.shape_cast %27 : vector<1x1x128xf32> to vector<1x128xf32>
    %cst_21 = arith.constant dense<0.000000e+00> : vector<128xf32>
    %29 = vector.multi_reduction <add>, %3, %cst_21 [0] : vector<16x128xf32> to vector<128xf32>
    %30 = vector.shape_cast %29 : vector<128xf32> to vector<1x128xf32>
    %31 = arith.addf %28, %30 : vector<1x128xf32>
    %c0_22 = arith.constant 0 : index
    %c0_23 = arith.constant 0 : index
    %c0_24 = arith.constant 0 : index
    %32 = vector.load %arg6[%c0_22, %c0_23, %c0_24] : memref<1x1x128xf32, #tpu.memory_space<vmem>>, vector<1x1x128xf32>
    %33 = vector.shape_cast %32 : vector<1x1x128xf32> to vector<1x128xf32>
    %34 = vector.shape_cast %31 : vector<1x128xf32> to vector<1x1x128xf32>
    tpu.vector_store %arg6[%c0_22, %c0_23, %c0_24], %34 {strides = array<i32>} : memref<1x1x128xf32, #tpu.memory_space<vmem>>, vector<1x1x128xf32>,
    return
  }
  func.func @transform_0(%arg0: i32, %arg1: i32) -> (i32, i32) {
    %c1_i32 = arith.constant 1 : i32
    %0 = arith.muli %arg0, %c1_i32 : i32
    %1 = arith.addi %0, %arg1 : i32
    %c0_i32 = arith.constant 0 : i32
    %2 = arith.minsi %1, %c0_i32 : i32
    %c0_i32_0 = arith.constant 0 : i32
    %c0_i32_1 = arith.constant 0 : i32
    return %2, %c0_i32_0 : i32, i32
  }
  func.func @transform_1(%arg0: i32, %arg1: i32) -> (i32, i32) {
    %c1_i32 = arith.constant 1 : i32
    %0 = arith.muli %arg0, %c1_i32 : i32
    %1 = arith.addi %0, %arg1 : i32
    %c0_i32 = arith.constant 0 : i32
    %2 = arith.minsi %1, %c0_i32 : i32
    %c0_i32_0 = arith.constant 0 : i32
    %c0_i32_1 = arith.constant 0 : i32
    return %2, %c0_i32_0 : i32, i32
  }
  func.func @transform_2(%arg0: i32, %arg1: i32) -> (i32, i32, i32) {
    %c0_i32 = arith.constant 0 : i32
    %c0_i32_0 = arith.constant 0 : i32
    %c0_i32_1 = arith.constant 0 : i32
    return %arg0, %c0_i32, %c0_i32_0 : i32, i32, i32
  }
  func.func @transform_3(%arg0: i32, %arg1: i32) -> (i32, i32, i32) {
    %c0_i32 = arith.constant 0 : i32
    %c0_i32_0 = arith.constant 0 : i32
    %c0_i32_1 = arith.constant 0 : i32
    return %arg0, %c0_i32, %c0_i32_0 : i32, i32, i32
  }
  func.func @transform_4(%arg0: i32, %arg1: i32) -> (i32, i32, i32) {
    %c0_i32 = arith.constant 0 : i32
    %c0_i32_0 = arith.constant 0 : i32
    %c0_i32_1 = arith.constant 0 : i32
    return %arg0, %c0_i32, %c0_i32_0 : i32, i32, i32
  }
}

</mosaic_0001>

<llo_original>
// kernel: tpu_custom_call.1
$region0: #{tpu_custom_call.1}
  #allocation0 [shape = 'u32[]', space=smem, size = 0x4, offset = 0x4, fixed_abs, tag = 'smem constant byte address 0x4 - core index']
  #allocation1 [shape = 'u32[144,128]{1,0:T(1,128)}', space=vmem, size = 0x12000, scoped, tag = 'internal scratch']
  %s0 = inlined_call_operand.hbm [shape: f32[16,128], index: 0, kind: input, shape index: {}]
  %s1 = inlined_call_operand.hbm [shape: f32[16,128], index: 1, kind: input, shape index: {}]
  %s2 = inlined_call_operand.hbm [shape: f32[1,1,128], index: 2, kind: output, shape index: {0}]
  %s3 = inlined_call_operand.hbm [shape: f32[1,1,128], index: 3, kind: output, shape index: {1}]
  %s4 = inlined_call_operand.hbm [shape: f32[1,1,128], index: 4, kind: output, shape index: {2}]
  %5 = xla_tuple %s2, %s3, %s4
  %s6 = sld [smem:[#allocation0]]
  $region46: #{tpu_custom_call.1} parent=0
    _
  %s8 = ssub.s32 1, %s6
  %s9 = scalar_select 0, %s8, %s6
  $region1: #{tpu_custom_call.1} parent=0
    #allocation2 [shape = 'u8[8192]{0}', space=vmem, size = 0x2000, scoped, tag = 'input window, operand 0, single buffered']
    #allocation3 [shape = 's32[1]{0}', space=sflag, size = 0x4, scoped, tag = 'scoped memory for tpu_custom_call.1']
    #allocation4 [shape = 's32[1]{0}', space=sflag, size = 0x4, scoped, tag = 'scoped memory for tpu_custom_call.1']
    #allocation5 [shape = 'u8[8192]{0}', space=vmem, size = 0x2000, scoped, tag = 'input window, operand 1, single buffered']
    #allocation6 [shape = 's32[1]{0}', space=sflag, size = 0x4, scoped, tag = 'scoped memory for tpu_custom_call.1']
    #allocation7 [shape = 'u8[512]{0}', space=vmem, size = 0x400, scoped, tag = 'output window, operand 0, single buffered']
    #allocation8 [shape = 'u8[512]{0}', space=vmem, size = 0x400, scoped, tag = 'output window, operand 1, single buffered']
    #allocation9 [shape = 's32[1]{0}', space=sflag, size = 0x4, scoped, tag = 'scoped memory for tpu_custom_call.1']
    #allocation10 [shape = 'u8[512]{0}', space=vmem, size = 0x400, scoped, tag = 'output window, operand 2, single buffered']
    %10 = vsyncpa [#allocation3], 0
    %11 = vsyncpa [#allocation6], 0
    %12 = vsyncpa [#allocation4], 0
    %13 = vsyncpa [#allocation9], 0
    // Predicated region
    $region2: #{tpu_custom_call.1} parent=1 // pred_check
      _
    $region3: #{tpu_custom_call.1} parent=1 // pred_check_branch
      %15 = sbr.rel (0) target = $region5
    $region4: #{tpu_custom_call.1} parent=1 // pred_region
      %s16 = sadd.s32 0, 0
      %p17 = scmp.lt.s32.totalorder %s16, 0
      %s18 = scalar_select %p17, %s16, 0
      %s19 = smul.u32 2, %s18
      %s21 = ssub.s32 256, 256
      %22 = vsyncadd [#allocation3], %s21
      %s23 = smul.addr %s19, 128
      %s24 = scalar_lea.hbm %s0, %s23
      %s25 = sshll.u32 [#allocation2], 4
      %s26 = int_to_ptr.vmem [resolvable:$true] %s25
      %31 = dma.hbm_to_vmem [thread:$0]  %s24, 256, %s26, [#allocation3], 128, 128, 8
    $region5: #{tpu_custom_call.1} parent=1 // pred_fallthru
      _
    // Predicated region
    $region6: #{tpu_custom_call.1} parent=1 // pred_check
      _
    $region7: #{tpu_custom_call.1} parent=1 // pred_check_branch
      %33 = sbr.rel (0) target = $region9
    $region8: #{tpu_custom_call.1} parent=1 // pred_region
      %s34 = sadd.s32 0, 0
      %p35 = scmp.lt.s32.totalorder %s34, 0
      %s36 = scalar_select %p35, %s34, 0
      %s37 = smul.u32 2, %s36
      %s39 = ssub.s32 256, 256
      %40 = vsyncadd [#allocation6], %s39
      %s41 = smul.addr %s37, 128
      %s42 = scalar_lea.hbm %s1, %s41
      %s43 = sshll.u32 [#allocation5], 4
      %s44 = int_to_ptr.vmem [resolvable:$true] %s43
      %49 = dma.hbm_to_vmem [thread:$0]  %s42, 256, %s44, [#allocation6], 128, 128, 8
    $region9: #{tpu_custom_call.1} parent=1 // pred_fallthru
      _
    // Predicated region
    $region10: #{tpu_custom_call.1} parent=1 // pred_check
      _
    $region11: #{tpu_custom_call.1} parent=1 // pred_check_branch
      %51 = sbr.rel (0) target = $region13
    $region12: #{tpu_custom_call.1} parent=1 // pred_region
      %52 = dma.done [#allocation3], 256
    $region13: #{tpu_custom_call.1} parent=1 // pred_fallthru
      _
    // Predicated region
    $region14: #{tpu_custom_call.1} parent=1 // pred_check
      _
    $region15: #{tpu_custom_call.1} parent=1 // pred_check_branch
      %54 = sbr.rel (0) target = $region17
    $region16: #{tpu_custom_call.1} parent=1 // pred_region
      %55 = dma.done [#allocation6], 256
    $region17: #{tpu_custom_call.1} parent=1 // pred_fallthru
      _
    %s56 = sadd.s32 0, 0
    %p57 = scmp.lt.s32.totalorder %s56, 0
    %s58 = scalar_select %p57, %s56, 0
    %s59 = smul.u32 2, %s58
    %s60 = sadd.s32 0, 0
    %p61 = scmp.lt.s32.totalorder %s60, 0
    %s62 = scalar_select %p61, %s60, 0
    %s63 = smul.u32 2, %s62
    %p64 = scmp.eq.s32.totalorder 0, 0
    // Predicated region
    $region18: #{tpu_custom_call.1} parent=1 // pred_check
      %p65 = pneg %p64
    $region19: #{tpu_custom_call.1} parent=1 // pred_check_branch
      %67 = sbr.rel (%p65) target = $region21
    $region20: #{tpu_custom_call.1} parent=1 // pred_region
      %68 = vst [vmem:[#allocation7] sm:$0x1] 0.0
      %69 = vst [vmem:[#allocation8] sm:$0x1] 0.0
      %70 = vst [vmem:[#allocation10] sm:$0x1] 0.0
    $region21: #{tpu_custom_call.1} parent=1 // pred_fallthru
      _
    %v71 = vld [vmem:[#allocation2] sm:$0xff]
    %v72 = vld [vmem:[#allocation2 + $0x8] sm:$0xff]
    %v73 = vld [vmem:[#allocation5] sm:$0xff]
    %v74 = vld [vmem:[#allocation5 + $0x8] sm:$0xff]
    %v75 = vxor.u32 %v73, 2147483648
    %v76 = vxor.u32 %v74, 2147483648
    %v77 = vmul.f32 %v75, 1.442695
    %v78 = vpow.pop %v77
    %v79 = vmul.f32 %v76, 1.442695
    %v80 = vpow.pop %v79
    %v81 = vadd.f32 %v78, 1.0
    %v82 = vadd.f32 %v80, 1.0
    %v83 = vrcp.pop %v81
    %v84 = vmul.f32 1.0, %v83
    %v85 = vrcp.pop %v82
    %v86 = vmul.f32 1.0, %v85
    %v87 = vld [vmem:[#allocation7] sm:$0x1]
    %v88 = vmul.f32 %v71, %v84
    %v89 = vmul.f32 %v72, %v86
    %v90 = vadd.f32 %v88, %v89
    %v91 = vrot.slane %v90, 4
    %v92 = vadd.f32 %v90, %v91
    %v93 = vrot.slane %v92, 2
    %v94 = vadd.f32 %v92, %v93
    %v95 = vrot.slane %v94, 1
    %v96 = vadd.f32 %v94, %v95
    %v97 = vadd.f32 %v87, %v96
    %98 = vst [vmem:[#allocation7] sm:$0x1] %v97
    %v99 = vld [vmem:[#allocation8] sm:$0x1]
    %v100 = vadd.f32 %v84, %v86
    %v101 = vrot.slane %v100, 4
    %v102 = vadd.f32 %v100, %v101
    %v103 = vrot.slane %v102, 2
    %v104 = vadd.f32 %v102, %v103
    %v105 = vrot.slane %v104, 1
    %v106 = vadd.f32 %v104, %v105
    %v107 = vadd.f32 %v99, %v106
    %108 = vst [vmem:[#allocation8] sm:$0x1] %v107
    %v109 = vld [vmem:[#allocation10] sm:$0x1]
    %v110 = vadd.f32 %v71, %v72
    %v111 = vrot.slane %v110, 4
    %v112 = vadd.f32 %v110, %v111
    %v113 = vrot.slane %v112, 2
    %v114 = vadd.f32 %v112, %v113
    %v115 = vrot.slane %v114, 1
    %v116 = vadd.f32 %v114, %v115
    %v117 = vadd.f32 %v109, %v116
    %118 = vst [vmem:[#allocation10] sm:$0x1] %v117
    // Predicated region
    $region22: #{tpu_custom_call.1} parent=1 // pred_check
      _
    $region23: #{tpu_custom_call.1} parent=1 // pred_check_branch
      %120 = sbr.rel (0) target = $region25
    $region24: #{tpu_custom_call.1} parent=1 // pred_region
      %s122 = ssub.s32 16, 16
      %123 = vsyncadd [#allocation4], %s122
      %s125 = sshll.u32 [#allocation7], 4
      %s126 = int_to_ptr.vmem [resolvable:$true] %s125
      %128 = dma.vmem_to_hbm [thread:$0]  %s126, 16, %s2, [#allocation4]
    $region25: #{tpu_custom_call.1} parent=1 // pred_fallthru
      _
    // Predicated region
    $region26: #{tpu_custom_call.1} parent=1 // pred_check
      _
    $region27: #{tpu_custom_call.1} parent=1 // pred_check_branch
      %130 = sbr.rel (0) target = $region29
    $region28: #{tpu_custom_call.1} parent=1 // pred_region
      %s132 = ssub.s32 16, 16
      %133 = vsyncadd [#allocation9], %s132
      %s135 = sshll.u32 [#allocation8], 4
      %s136 = int_to_ptr.vmem [resolvable:$true] %s135
      %138 = dma.vmem_to_hbm [thread:$0]  %s136, 16, %s3, [#allocation9]
    $region29: #{tpu_custom_call.1} parent=1 // pred_fallthru
      _
    // Predicated region
    $region30: #{tpu_custom_call.1} parent=1 // pred_check
      _
    $region31: #{tpu_custom_call.1} parent=1 // pred_check_branch
      %140 = sbr.rel (0) target = $region33
    $region32: #{tpu_custom_call.1} parent=1 // pred_region
      %s142 = ssub.s32 16, 16
      %143 = vsyncadd [#allocation9], %s142
      %s145 = sshll.u32 [#allocation10], 4
      %s146 = int_to_ptr.vmem [resolvable:$true] %s145
      %148 = dma.vmem_to_hbm [thread:$0]  %s146, 16, %s4, [#allocation9]
    $region33: #{tpu_custom_call.1} parent=1 // pred_fallthru
      _
    // Predicated region
    $region34: #{tpu_custom_call.1} parent=1 // pred_check
      _
    $region35: #{tpu_custom_call.1} parent=1 // pred_check_branch
      %150 = sbr.rel (0) target = $region37
    $region36: #{tpu_custom_call.1} parent=1 // pred_region
      %151 = dma.done [#allocation4], 16
    $region37: #{tpu_custom_call.1} parent=1 // pred_fallthru
      _
    // Predicated region
    $region38: #{tpu_custom_call.1} parent=1 // pred_check
      _
    $region39: #{tpu_custom_call.1} parent=1 // pred_check_branch
      %153 = sbr.rel (0) target = $region41
    $region40: #{tpu_custom_call.1} parent=1 // pred_region
      %154 = dma.done [#allocation9], 16
    $region41: #{tpu_custom_call.1} parent=1 // pred_fallthru
      _
    // Predicated region
    $region42: #{tpu_custom_call.1} parent=1 // pred_check
      _
    $region43: #{tpu_custom_call.1} parent=1 // pred_check_branch
      %156 = sbr.rel (0) target = $region45
    $region44: #{tpu_custom_call.1} parent=1 // pred_region
      %157 = dma.done [#allocation9], 16
    $region45: #{tpu_custom_call.1} parent=1 // pred_fallthru
      _
    %158 = vsyncpa [#allocation3], 1
    %159 = vsyncpa [#allocation6], 1
    %160 = vsyncpa [#allocation4], 1
    %161 = vsyncpa [#allocation9], 1

</llo_original>
